<compile_context>
chip_gen: v7x
topology: tpu7x:2x2x1
jax: 0.10.0
libtpu: 0.0.40
codegen_flags: <defaults>
</compile_context>

<pallas_src>
import math
from functools import partial

import jax
import jax.numpy as jnp
from jax.experimental import pallas as pl
from jax.experimental.pallas import tpu as pltpu

_HALF_LOG_2PI = 0.5 * math.log(2.0 * math.pi)


def _round_up(x, m):
    return ((x + m - 1) // m) * m


def _cdiv(a, b):
    return -(-a // b)


def _pad2(x, rows, cols):
    r, c = x.shape
    if r == rows and c == cols:
        return x
    return jnp.pad(x, ((0, rows - r), (0, cols - c)))


def policy_kernel(x_ref, w1_ref, b1_ref, w2_ref, b2_ref, wh_ref, bh_ref, sb_ref,
                  out_ref, *, num_actions, in_pad, out_width):
    A = num_actions
    slab = x_ref[...]                              # (TILE_B, IN_PAD + A), f32
    x = slab[:, :in_pad]
    eps = slab[:, in_pad:in_pad + A]

    cdt = w1_ref.dtype                             # bf16 (default) or f32

    # shared = Linear -> ReLU -> (Dropout=identity) -> Linear -> ReLU -> (Dropout=identity)
    h1 = jnp.maximum(
        jnp.dot(x.astype(cdt), w1_ref[...], preferred_element_type=jnp.float32)
        + b1_ref[...], 0.0)
    h2 = jnp.maximum(
        jnp.dot(h1.astype(cdt), w2_ref[...], preferred_element_type=jnp.float32)
        + b2_ref[...], 0.0)

    # fused heads: [mean | log_std] in one matmul
    head = (jnp.dot(h2.astype(cdt), wh_ref[...], preferred_element_type=jnp.float32)
            + bh_ref[...])
    mean = head[:, :A]
    log_std = jnp.clip(head[:, A:2 * A], -20.0, 2.0)
    std = jnp.exp(log_std)

    # Normal(mean, std).rsample() with externally supplied standard-normal noise
    sample = mean + std * eps

    scale = sb_ref[0:1, :]                         # (1, A) action_scale
    bias = sb_ref[1:2, :]                          # (1, A) action_bias

    # One EUP tanh pass over a lane-adjacent (TILE_B, 2A) block.
    t2 = jnp.tanh(jnp.concatenate([sample, mean], axis=-1))
    t = t2[:, :A]
    t_mean = t2[:, A:2 * A]

    action = t * scale + bias
    mean_sq = t_mean * scale + bias

    # Normal.log_prob(sample) with sample = mean + std*eps:
    #   -0.5*eps^2 - log_std - 0.5*log(2*pi), plus tanh-squash correction.
    logp_elem = (-0.5 * eps * eps - log_std - _HALF_LOG_2PI
                 - jnp.log(scale * (1.0 - t * t) + 1e-6))
    logp = jnp.sum(logp_elem, axis=1, keepdims=True)

    # Direct sub-slice stores into the lane-dense output tile (no concat temp).
    pad = out_width - (4 * A + 1)
    if pad > 0:
        out_ref[:, 4 * A + 1:] = jnp.zeros((action.shape[0], pad), jnp.float32)
    out_ref[:, 0:A] = action
    out_ref[:, A:2 * A] = mean_sq
    out_ref[:, 2 * A:3 * A] = std
    out_ref[:, 3 * A:4 * A] = sample
    out_ref[:, 4 * A:4 * A + 1] = logp


def stochastic_policy_forward(state, params, eps, action_scale=1.0, action_bias=0.0,
                              tile_b=2048, matmul_dtype=jnp.bfloat16):
    B, num_inputs = state.shape
    hidden = params["w1"].shape[1]
    A = params["wm"].shape[1]

    IN_PAD = _round_up(num_inputs, 8)            # sublane-clean in-features
    H_PAD = _round_up(hidden, 128)               # lane-dense hidden features
    OUT_W = _round_up(4 * A + 1, 128)            # lane-dense packed output slab
    SLAB_W = IN_PAD + A                          # [state | eps] columns

    # --- adaptive batch tiling (multiple of 8, capped by a VMEM activation budget) ---
    tile_b = max(8, (int(tile_b) // 8) * 8)
    per_row_bytes = 12 * max(H_PAD, 128) + 8 * (SLAB_W + OUT_W)   # rough live bytes / row
    act_budget = 20 << 20
    tile_cap = max(8, (act_budget // per_row_bytes) // 8 * 8)
    tile_b = min(tile_b, tile_cap)

    B8 = _round_up(B, 8)
    n_tiles = _cdiv(B8, tile_b)
    TILE_B = _round_up(_cdiv(B8, n_tiles), 8)
    B_pad = TILE_B * n_tiles

    # --- wrapper-side weight packing / padding (layout plumbing, not compute) ---
    wdt = matmul_dtype
    w1 = _pad2(params["w1"], IN_PAD, H_PAD).astype(wdt)
    b1 = _pad2(params["b1"], 1, H_PAD).astype(jnp.float32)
    w2 = _pad2(params["w2"], H_PAD, H_PAD).astype(wdt)
    b2 = _pad2(params["b2"], 1, H_PAD).astype(jnp.float32)
    wh = _pad2(jnp.concatenate([params["wm"], params["wls"]], axis=1),
               H_PAD, 2 * A).astype(wdt)
    bh = jnp.concatenate([params["bm"], params["bls"]], axis=1).astype(jnp.float32)

    # scalar or per-action action_scale / action_bias packed into one (2, A) block
    scale_vec = jnp.broadcast_to(jnp.asarray(action_scale, jnp.float32).reshape(-1), (A,))
    bias_vec = jnp.broadcast_to(jnp.asarray(action_bias, jnp.float32).reshape(-1), (A,))
    sb = jnp.stack([scale_vec, bias_vec], axis=0).astype(jnp.float32)

    # single batch-tiled input slab: [state | eps]
    x = _pad2(state.astype(jnp.float32), B_pad, IN_PAD)
    e = _pad2(eps.astype(jnp.float32), B_pad, A)
    slab = jnp.concatenate([x, e], axis=1)

    # explicit scoped-VMEM budget (leave headroom vs v7x's 64 MiB physical)
    wbytes = int(w1.size * w1.dtype.itemsize + w2.size * w2.dtype.itemsize
                 + wh.size * wh.dtype.itemsize
                 + (b1.size + b2.size + bh.size + sb.size) * 4)
    est = 2 * wbytes + TILE_B * per_row_bytes + (4 << 20)
    vmem_limit = int(min(max(est, 32 << 20), 48 << 20))

    kernel = partial(policy_kernel, num_actions=A, in_pad=IN_PAD, out_width=OUT_W)

    tile_map = lambda i: (i, 0)      # batch-tiled arrays
    const_map = lambda i: (0, 0)     # weights/biases resident across grid steps

    def _run(advanced):
        const_kw = {"pipeline_mode": pl.Buffered(1)} if advanced else {}
        if advanced and n_tiles >= 2:
            semantics = (pltpu.CORE_PARALLEL,)    # split batch across TCs on v7x
        else:
            semantics = ("parallel",)
        return pl.pallas_call(
            kernel,
            out_shape=jax.ShapeDtypeStruct((B_pad, OUT_W), jnp.float32),
            grid=(n_tiles,),
            in_specs=[
                pl.BlockSpec((TILE_B, SLAB_W), tile_map),                # [state|eps] tile
                pl.BlockSpec((IN_PAD, H_PAD), const_map, **const_kw),    # w1
                pl.BlockSpec((1, H_PAD), const_map, **const_kw),         # b1
                pl.BlockSpec((H_PAD, H_PAD), const_map, **const_kw),     # w2
                pl.BlockSpec((1, H_PAD), const_map, **const_kw),         # b2
                pl.BlockSpec((H_PAD, 2 * A), const_map, **const_kw),     # fused head W
                pl.BlockSpec((1, 2 * A), const_map, **const_kw),         # fused head b
                pl.BlockSpec((2, A), const_map, **const_kw),             # [scale; bias]
            ],
            out_specs=pl.BlockSpec((TILE_B, OUT_W), tile_map),
            compiler_params=pltpu.CompilerParams(
                dimension_semantics=semantics, vmem_limit_bytes=vmem_limit),
        )(slab, w1, b1, w2, b2, wh, bh, sb)

    try:
        packed = _run(True)
    except Exception:
        # Fallback if CORE_PARALLEL / Buffered(1) are unsupported on this chip / jax.
        packed = _run(False)

    # Unpack the lane-dense slab (cheap slices in the wrapper).
    action = packed[:B, 0:A]
    mean = packed[:B, A:2 * A]
    std = packed[:B, 2 * A:3 * A]
    sample = packed[:B, 3 * A:4 * A]
    logp = packed[:B, 4 * A:4 * A + 1]
    return action, logp, mean, std, sample


def init_params(key, num_inputs, num_actions, hidden_dim):
    """Deterministic PyTorch-Linear-style init (uniform +/- 1/sqrt(fan_in))."""
    ks = jax.random.split(key, 8)

    def lin(kw, kb, fan_in, fan_out):
        bound = 1.0 / math.sqrt(fan_in)
        w = jax.random.uniform(kw, (fan_in, fan_out), jnp.float32, -bound, bound)
        b = jax.random.uniform(kb, (1, fan_out), jnp.float32, -bound, bound)
        return w, b

    w1, b1 = lin(ks[0], ks[1], num_inputs, hidden_dim)
    w2, b2 = lin(ks[2], ks[3], hidden_dim, hidden_dim)
    wm, bm = lin(ks[4], ks[5], hidden_dim, num_actions)
    wls, bls = lin(ks[6], ks[7], hidden_dim, num_actions)
    return dict(w1=w1, b1=b1, w2=w2, b2=b2, wm=wm, bm=bm, wls=wls, bls=bls)


def _reference_forward(state, params, eps, action_scale=1.0, action_bias=0.0):
    """Pure-JAX reference matching the PyTorch forward (dropout = identity)."""
    h1 = jnp.maximum(state @ params["w1"] + params["b1"], 0.0)
    h2 = jnp.maximum(h1 @ params["w2"] + params["b2"], 0.0)
    mean = h2 @ params["wm"] + params["bm"]
    log_std = jnp.clip(h2 @ params["wls"] + params["bls"], -20.0, 2.0)
    std = jnp.exp(log_std)
    sample = mean + std * eps
    t = jnp.tanh(sample)
    action = t * action_scale + action_bias
    lp = (-((sample - mean) ** 2) / (2.0 * std * std) - log_std
          - 0.5 * jnp.log(2.0 * jnp.pi))
    lp = lp - jnp.log(action_scale * (1.0 - t * t) + 1e-6)
    lp = jnp.sum(lp, axis=1, keepdims=True)
    mean_sq = jnp.tanh(mean) * action_scale + action_bias
    return action, lp, mean_sq, std, sample


if __name__ == "__main__":
    key = jax.random.PRNGKey(0)
    kp, kx, ke = jax.random.split(key, 3)

    B, num_inputs, num_actions, hidden_dim = 4, 16, 8, 32

    params = init_params(kp, num_inputs, num_actions, hidden_dim)
    state = jax.random.normal(kx, (B, num_inputs), jnp.float32)
    eps = jax.random.normal(ke, (B, num_actions), jnp.float32)

    # Default path: bf16 MXU inputs, f32 accumulation/epilogue (loose tolerance).
    outs = jax.block_until_ready(stochastic_policy_forward(state, params, eps))
    refs = _reference_forward(state, params, eps)
    atols = (5e-2, 2.5e-1, 5e-2, 5e-2, 5e-2)   # log_prob sums A terms -> wider atol
    for got, want, atol in zip(outs, refs, atols):
        assert got.shape == want.shape, (got.shape, want.shape)
        assert jnp.allclose(got, want, atol=atol, rtol=5e-2), \
            float(jnp.max(jnp.abs(got - want)))

    # Exact f32 path, with per-action scale/bias vectors (tight tolerance).
    a_scale = jnp.linspace(0.5, 2.0, num_actions, dtype=jnp.float32)
    a_bias = jnp.linspace(-0.3, 0.3, num_actions, dtype=jnp.float32)
    outs32 = jax.block_until_ready(
        stochastic_policy_forward(state, params, eps, action_scale=a_scale,
                                  action_bias=a_bias, matmul_dtype=jnp.float32))
    refs32 = _reference_forward(state, params, eps, a_scale, a_bias)
    for got, want in zip(outs32, refs32):
        assert got.shape == want.shape, (got.shape, want.shape)
        assert jnp.allclose(got, want, atol=2e-5, rtol=2e-5), \
            float(jnp.max(jnp.abs(got - want)))

    print("KERNEL_OK")
</pallas_src>

<mosaic_0001>
module attributes {stable_mosaic.version = 11 : i64} {
  func.func @policy_kernel(%arg0: i32, %arg1: memref<8x24xf32, #tpu.memory_space<vmem>>, %arg2: memref<16x128xbf16, #tpu.memory_space<vmem>>, %arg3: memref<1x128xf32, #tpu.memory_space<vmem>>, %arg4: memref<128x128xbf16, #tpu.memory_space<vmem>>, %arg5: memref<1x128xf32, #tpu.memory_space<vmem>>, %arg6: memref<128x16xbf16, #tpu.memory_space<vmem>>, %arg7: memref<1x16xf32, #tpu.memory_space<vmem>>, %arg8: memref<2x8xf32, #tpu.memory_space<vmem>>, %arg9: memref<8x128xf32, #tpu.memory_space<vmem>>) attributes {dimension_semantics = [#tpu.dimension_semantics<parallel>], iteration_bounds = array<i64: 1>, scalar_prefetch = 0 : i64, scratch_operands = 0 : i64, tpu.core_type = #tpu.core_type<tc>, window_params = [{transform_indices = @transform_0, window_bounds = array<i64: 8, 24>}, {pipeline_mode = #tpu.pipeline_mode<synchronous>, transform_indices = @transform_1, window_bounds = array<i64: 16, 128>}, {pipeline_mode = #tpu.pipeline_mode<synchronous>, transform_indices = @transform_2, window_bounds = array<i64: 1, 128>}, {pipeline_mode = #tpu.pipeline_mode<synchronous>, transform_indices = @transform_3, window_bounds = array<i64: 128, 128>}, {pipeline_mode = #tpu.pipeline_mode<synchronous>, transform_indices = @transform_4, window_bounds = array<i64: 1, 128>}, {pipeline_mode = #tpu.pipeline_mode<synchronous>, transform_indices = @transform_5, window_bounds = array<i64: 128, 16>}, {pipeline_mode = #tpu.pipeline_mode<synchronous>, transform_indices = @transform_6, window_bounds = array<i64: 1, 16>}, {pipeline_mode = #tpu.pipeline_mode<synchronous>, transform_indices = @transform_7, window_bounds = array<i64: 2, 8>}, {transform_indices = @transform_8, window_bounds = array<i64: 8, 128>}]} {
    %c0 = arith.constant 0 : index
    %c0_0 = arith.constant 0 : index
    %0 = vector.load %arg1[%c0, %c0_0] : memref<8x24xf32, #tpu.memory_space<vmem>>, vector<8x24xf32>
    %1 = vector.extract_strided_slice %0 {offsets = [0, 0], sizes = [8, 16], strides = [1, 1]} : vector<8x24xf32> to vector<8x16xf32>
    %2 = vector.extract_strided_slice %0 {offsets = [0, 16], sizes = [8, 8], strides = [1, 1]} : vector<8x24xf32> to vector<8x8xf32>
    %3 = arith.truncf %1 : vector<8x16xf32> to vector<8x16xbf16>
    %c0_1 = arith.constant 0 : index
    %c0_2 = arith.constant 0 : index
    %4 = vector.load %arg2[%c0_1, %c0_2] : memref<16x128xbf16, #tpu.memory_space<vmem>>, vector<16x128xbf16>
    %cst = arith.constant dense<0.000000e+00> : vector<8x128xf32>
    %5 = tpu.matmul %3, %4, %cst {dimension_numbers = #tpu.dot_dimension_numbers<[1], [0], [0], [1], [0, 0, 1, 1], [], []>} : vector<8x16xbf16>, vector<16x128xbf16>, vector<8x128xf32> -> vector<8x128xf32>
    %c0_3 = arith.constant 0 : index
    %c0_4 = arith.constant 0 : index
    %6 = vector.load %arg3[%c0_3, %c0_4] : memref<1x128xf32, #tpu.memory_space<vmem>>, vector<1x128xf32>
    %7 = vector.broadcast %6 : vector<1x128xf32> to vector<8x128xf32>
    %8 = arith.addf %5, %7 : vector<8x128xf32>
    %cst_5 = arith.constant 0.000000e+00 : f32
    %9 = vector.broadcast %cst_5 : f32 to vector<8x128xf32>
    %10 = arith.maximumf %8, %9 : vector<8x128xf32>
    %11 = arith.truncf %10 : vector<8x128xf32> to vector<8x128xbf16>
    %c0_6 = arith.constant 0 : index
    %c0_7 = arith.constant 0 : index
    %12 = vector.load %arg4[%c0_6, %c0_7] : memref<128x128xbf16, #tpu.memory_space<vmem>>, vector<128x128xbf16>
    %cst_8 = arith.constant dense<0.000000e+00> : vector<8x128xf32>
    %13 = tpu.matmul %11, %12, %cst_8 {dimension_numbers = #tpu.dot_dimension_numbers<[1], [0], [0], [1], [0, 0, 1, 1], [], []>} : vector<8x128xbf16>, vector<128x128xbf16>, vector<8x128xf32> -> vector<8x128xf32>
    %c0_9 = arith.constant 0 : index
    %c0_10 = arith.constant 0 : index
    %14 = vector.load %arg5[%c0_9, %c0_10] : memref<1x128xf32, #tpu.memory_space<vmem>>, vector<1x128xf32>
    %15 = vector.broadcast %14 : vector<1x128xf32> to vector<8x128xf32>
    %16 = arith.addf %13, %15 : vector<8x128xf32>
    %cst_11 = arith.constant 0.000000e+00 : f32
    %17 = vector.broadcast %cst_11 : f32 to vector<8x128xf32>
    %18 = arith.maximumf %16, %17 : vector<8x128xf32>
    %19 = arith.truncf %18 : vector<8x128xf32> to vector<8x128xbf16>
    %c0_12 = arith.constant 0 : index
    %c0_13 = arith.constant 0 : index
    %20 = vector.load %arg6[%c0_12, %c0_13] : memref<128x16xbf16, #tpu.memory_space<vmem>>, vector<128x16xbf16>
    %cst_14 = arith.constant dense<0.000000e+00> : vector<8x16xf32>
    %21 = tpu.matmul %19, %20, %cst_14 {dimension_numbers = #tpu.dot_dimension_numbers<[1], [0], [0], [1], [0, 0, 1, 1], [], []>} : vector<8x128xbf16>, vector<128x16xbf16>, vector<8x16xf32> -> vector<8x16xf32>
    %c0_15 = arith.constant 0 : index
    %c0_16 = arith.constant 0 : index
    %22 = vector.load %arg7[%c0_15, %c0_16] : memref<1x16xf32, #tpu.memory_space<vmem>>, vector<1x16xf32>
    %23 = vector.broadcast %22 : vector<1x16xf32> to vector<8x16xf32>
    %24 = arith.addf %21, %23 : vector<8x16xf32>
    %25 = vector.extract_strided_slice %24 {offsets = [0, 0], sizes = [8, 8], strides = [1, 1]} : vector<8x16xf32> to vector<8x8xf32>
    %26 = vector.extract_strided_slice %24 {offsets = [0, 8], sizes = [8, 8], strides = [1, 1]} : vector<8x16xf32> to vector<8x8xf32>
    %cst_17 = arith.constant -2.000000e+01 : f32
    %cst_18 = arith.constant 2.000000e+00 : f32
    %27 = vector.broadcast %cst_17 : f32 to vector<8x8xf32>
    %28 = arith.maximumf %27, %26 : vector<8x8xf32>
    %29 = vector.broadcast %cst_18 : f32 to vector<8x8xf32>
    %30 = arith.minimumf %29, %28 : vector<8x8xf32>
    %31 = math.exp %30 : vector<8x8xf32>
    %32 = arith.mulf %31, %2 : vector<8x8xf32>
    %33 = arith.addf %25, %32 : vector<8x8xf32>
    %c0_19 = arith.constant 0 : index
    %c0_20 = arith.constant 0 : index
    %34 = vector.load %arg8[%c0_19, %c0_20] : memref<2x8xf32, #tpu.memory_space<vmem>>, vector<1x8xf32>
    %c1 = arith.constant 1 : index
    %c0_21 = arith.constant 0 : index
    %35 = vector.load %arg8[%c1, %c0_21] : memref<2x8xf32, #tpu.memory_space<vmem>>, vector<1x8xf32>
    %36 = tpu.concatenate %33, %25 in 1 : vector<8x8xf32>, vector<8x8xf32> -> vector<8x16xf32>
    %37 = math.tanh %36 : vector<8x16xf32>
    %38 = vector.extract_strided_slice %37 {offsets = [0, 0], sizes = [8, 8], strides = [1, 1]} : vector<8x16xf32> to vector<8x8xf32>
    %39 = vector.extract_strided_slice %37 {offsets = [0, 8], sizes = [8, 8], strides = [1, 1]} : vector<8x16xf32> to vector<8x8xf32>
    %40 = vector.broadcast %34 : vector<1x8xf32> to vector<8x8xf32>
    %41 = arith.mulf %38, %40 : vector<8x8xf32>
    %42 = vector.broadcast %35 : vector<1x8xf32> to vector<8x8xf32>
    %43 = arith.addf %41, %42 : vector<8x8xf32>
    %44 = vector.broadcast %34 : vector<1x8xf32> to vector<8x8xf32>
    %45 = arith.mulf %39, %44 : vector<8x8xf32>
    %46 = vector.broadcast %35 : vector<1x8xf32> to vector<8x8xf32>
    %47 = arith.addf %45, %46 : vector<8x8xf32>
    %cst_22 = arith.constant -5.000000e-01 : f32
    %48 = vector.broadcast %cst_22 : f32 to vector<8x8xf32>
    %49 = arith.mulf %48, %2 : vector<8x8xf32>
    %50 = arith.mulf %49, %2 : vector<8x8xf32>
    %51 = arith.subf %50, %30 : vector<8x8xf32>
    %cst_23 = arith.constant 0.918938517 : f32
    %52 = vector.broadcast %cst_23 : f32 to vector<8x8xf32>
    %53 = arith.subf %51, %52 : vector<8x8xf32>
    %54 = arith.mulf %38, %38 : vector<8x8xf32>
    %cst_24 = arith.constant 1.000000e+00 : f32
    %55 = vector.broadcast %cst_24 : f32 to vector<8x8xf32>
    %56 = arith.subf %55, %54 : vector<8x8xf32>
    %57 = vector.broadcast %34 : vector<1x8xf32> to vector<8x8xf32>
    %58 = arith.mulf %57, %56 : vector<8x8xf32>
    %cst_25 = arith.constant 9.99999997E-7 : f32
    %59 = vector.broadcast %cst_25 : f32 to vector<8x8xf32>
    %60 = arith.addf %58, %59 : vector<8x8xf32>
    %61 = math.log %60 : vector<8x8xf32>
    %62 = arith.subf %53, %61 : vector<8x8xf32>
    %cst_26 = arith.constant dense<0.000000e+00> : vector<8xf32>
    %63 = vector.multi_reduction <add>, %62, %cst_26 [1] : vector<8x8xf32> to vector<8xf32>
    %64 = vector.shape_cast %63 : vector<8xf32> to vector<8x1xf32>
    %cst_27 = arith.constant 0.000000e+00 : f32
    %65 = vector.broadcast %cst_27 : f32 to vector<8x95xf32>
    %c0_28 = arith.constant 0 : index
    %c33 = arith.constant 33 : index
    %66 = vector.load %arg9[%c0_28, %c33] : memref<8x128xf32, #tpu.memory_space<vmem>>, vector<8x95xf32>
    tpu.vector_store %arg9[%c0_28, %c33], %65 {strides = array<i32>} : memref<8x128xf32, #tpu.memory_space<vmem>>, vector<8x95xf32>,
    %c0_29 = arith.constant 0 : index
    %c0_30 = arith.constant 0 : index
    %67 = vector.load %arg9[%c0_29, %c0_30] : memref<8x128xf32, #tpu.memory_space<vmem>>, vector<8x8xf32>
    tpu.vector_store %arg9[%c0_29, %c0_30], %43 {strides = array<i32>} : memref<8x128xf32, #tpu.memory_space<vmem>>, vector<8x8xf32>,
    %c0_31 = arith.constant 0 : index
    %c8 = arith.constant 8 : index
    %68 = vector.load %arg9[%c0_31, %c8] : memref<8x128xf32, #tpu.memory_space<vmem>>, vector<8x8xf32>
    tpu.vector_store %arg9[%c0_31, %c8], %47 {strides = array<i32>} : memref<8x128xf32, #tpu.memory_space<vmem>>, vector<8x8xf32>,
    %c0_32 = arith.constant 0 : index
    %c16 = arith.constant 16 : index
    %69 = vector.load %arg9[%c0_32, %c16] : memref<8x128xf32, #tpu.memory_space<vmem>>, vector<8x8xf32>
    tpu.vector_store %arg9[%c0_32, %c16], %31 {strides = array<i32>} : memref<8x128xf32, #tpu.memory_space<vmem>>, vector<8x8xf32>,
    %c0_33 = arith.constant 0 : index
    %c24 = arith.constant 24 : index
    %70 = vector.load %arg9[%c0_33, %c24] : memref<8x128xf32, #tpu.memory_space<vmem>>, vector<8x8xf32>
    tpu.vector_store %arg9[%c0_33, %c24], %33 {strides = array<i32>} : memref<8x128xf32, #tpu.memory_space<vmem>>, vector<8x8xf32>,
    %c0_34 = arith.constant 0 : index
    %c32 = arith.constant 32 : index
    %71 = vector.load %arg9[%c0_34, %c32] : memref<8x128xf32, #tpu.memory_space<vmem>>, vector<8x1xf32>
    tpu.vector_store %arg9[%c0_34, %c32], %64 {strides = array<i32>} : memref<8x128xf32, #tpu.memory_space<vmem>>, vector<8x1xf32>,
    return
  }
  func.func @transform_0(%arg0: i32) -> (i32, i32) {
    %c0_i32 = arith.constant 0 : i32
    %c0_i32_0 = arith.constant 0 : i32
    return %arg0, %c0_i32 : i32, i32
  }
  func.func @transform_1(%arg0: i32) -> (i32, i32) {
    %c0_i32 = arith.constant 0 : i32
    %c0_i32_0 = arith.constant 0 : i32
    %c0_i32_1 = arith.constant 0 : i32
    return %c0_i32, %c0_i32_0 : i32, i32
  }
  func.func @transform_2(%arg0: i32) -> (i32, i32) {
    %c0_i32 = arith.constant 0 : i32
    %c0_i32_0 = arith.constant 0 : i32
    %c0_i32_1 = arith.constant 0 : i32
    return %c0_i32, %c0_i32_0 : i32, i32
  }
  func.func @transform_3(%arg0: i32) -> (i32, i32) {
    %c0_i32 = arith.constant 0 : i32
    %c0_i32_0 = arith.constant 0 : i32
    %c0_i32_1 = arith.constant 0 : i32
    return %c0_i32, %c0_i32_0 : i32, i32
  }
  func.func @transform_4(%arg0: i32) -> (i32, i32) {
    %c0_i32 = arith.constant 0 : i32
    %c0_i32_0 = arith.constant 0 : i32
    %c0_i32_1 = arith.constant 0 : i32
    return %c0_i32, %c0_i32_0 : i32, i32
  }
  func.func @transform_5(%arg0: i32) -> (i32, i32) {
    %c0_i32 = arith.constant 0 : i32
    %c0_i32_0 = arith.constant 0 : i32
    %c0_i32_1 = arith.constant 0 : i32
    return %c0_i32, %c0_i32_0 : i32, i32
  }
  func.func @transform_6(%arg0: i32) -> (i32, i32) {
    %c0_i32 = arith.constant 0 : i32
    %c0_i32_0 = arith.constant 0 : i32
    %c0_i32_1 = arith.constant 0 : i32
    return %c0_i32, %c0_i32_0 : i32, i32
  }
  func.func @transform_7(%arg0: i32) -> (i32, i32) {
    %c0_i32 = arith.constant 0 : i32
    %c0_i32_0 = arith.constant 0 : i32
    %c0_i32_1 = arith.constant 0 : i32
    return %c0_i32, %c0_i32_0 : i32, i32
  }
  func.func @transform_8(%arg0: i32) -> (i32, i32) {
    %c0_i32 = arith.constant 0 : i32
    %c0_i32_0 = arith.constant 0 : i32
    return %arg0, %c0_i32 : i32, i32
  }
}

module attributes {stable_mosaic.version = 11 : i64} {
  func.func @policy_kernel(%arg0: i32, %arg1: memref<8x24xf32, #tpu.memory_space<vmem>>, %arg2: memref<16x128xbf16, #tpu.memory_space<vmem>>, %arg3: memref<1x128xf32, #tpu.memory_space<vmem>>, %arg4: memref<128x128xbf16, #tpu.memory_space<vmem>>, %arg5: memref<1x128xf32, #tpu.memory_space<vmem>>, %arg6: memref<128x16xbf16, #tpu.memory_space<vmem>>, %arg7: memref<1x16xf32, #tpu.memory_space<vmem>>, %arg8: memref<2x8xf32, #tpu.memory_space<vmem>>, %arg9: memref<8x128xf32, #tpu.memory_space<vmem>>) attributes {dimension_semantics = [#tpu.dimension_semantics<parallel>], iteration_bounds = array<i64: 1>, scalar_prefetch = 0 : i64, scratch_operands = 0 : i64, tpu.core_type = #tpu.core_type<tc>, window_params = [{transform_indices = @transform_0, window_bounds = array<i64: 8, 24>}, {pipeline_mode = #tpu.pipeline_mode<synchronous>, transform_indices = @transform_1, window_bounds = array<i64: 16, 128>}, {pipeline_mode = #tpu.pipeline_mode<synchronous>, transform_indices = @transform_2, window_bounds = array<i64: 1, 128>}, {pipeline_mode = #tpu.pipeline_mode<synchronous>, transform_indices = @transform_3, window_bounds = array<i64: 128, 128>}, {pipeline_mode = #tpu.pipeline_mode<synchronous>, transform_indices = @transform_4, window_bounds = array<i64: 1, 128>}, {pipeline_mode = #tpu.pipeline_mode<synchronous>, transform_indices = @transform_5, window_bounds = array<i64: 128, 16>}, {pipeline_mode = #tpu.pipeline_mode<synchronous>, transform_indices = @transform_6, window_bounds = array<i64: 1, 16>}, {pipeline_mode = #tpu.pipeline_mode<synchronous>, transform_indices = @transform_7, window_bounds = array<i64: 2, 8>}, {transform_indices = @transform_8, window_bounds = array<i64: 8, 128>}]} {
    %c0 = arith.constant 0 : index
    %c0_0 = arith.constant 0 : index
    %0 = vector.load %arg1[%c0, %c0_0] : memref<8x24xf32, #tpu.memory_space<vmem>>, vector<8x24xf32>
    %1 = vector.extract_strided_slice %0 {offsets = [0, 0], sizes = [8, 16], strides = [1, 1]} : vector<8x24xf32> to vector<8x16xf32>
    %2 = vector.extract_strided_slice %0 {offsets = [0, 16], sizes = [8, 8], strides = [1, 1]} : vector<8x24xf32> to vector<8x8xf32>
    %3 = arith.truncf %1 : vector<8x16xf32> to vector<8x16xbf16>
    %c0_1 = arith.constant 0 : index
    %c0_2 = arith.constant 0 : index
    %4 = vector.load %arg2[%c0_1, %c0_2] : memref<16x128xbf16, #tpu.memory_space<vmem>>, vector<16x128xbf16>
    %cst = arith.constant dense<0.000000e+00> : vector<8x128xf32>
    %5 = tpu.matmul %3, %4, %cst {dimension_numbers = #tpu.dot_dimension_numbers<[1], [0], [0], [1], [0, 0, 1, 1], [], []>} : vector<8x16xbf16>, vector<16x128xbf16>, vector<8x128xf32> -> vector<8x128xf32>
    %c0_3 = arith.constant 0 : index
    %c0_4 = arith.constant 0 : index
    %6 = vector.load %arg3[%c0_3, %c0_4] : memref<1x128xf32, #tpu.memory_space<vmem>>, vector<1x128xf32>
    %7 = vector.broadcast %6 : vector<1x128xf32> to vector<8x128xf32>
    %8 = arith.addf %5, %7 : vector<8x128xf32>
    %cst_5 = arith.constant 0.000000e+00 : f32
    %9 = vector.broadcast %cst_5 : f32 to vector<8x128xf32>
    %10 = arith.maximumf %8, %9 : vector<8x128xf32>
    %11 = arith.truncf %10 : vector<8x128xf32> to vector<8x128xbf16>
    %c0_6 = arith.constant 0 : index
    %c0_7 = arith.constant 0 : index
    %12 = vector.load %arg4[%c0_6, %c0_7] : memref<128x128xbf16, #tpu.memory_space<vmem>>, vector<128x128xbf16>
    %cst_8 = arith.constant dense<0.000000e+00> : vector<8x128xf32>
    %13 = tpu.matmul %11, %12, %cst_8 {dimension_numbers = #tpu.dot_dimension_numbers<[1], [0], [0], [1], [0, 0, 1, 1], [], []>} : vector<8x128xbf16>, vector<128x128xbf16>, vector<8x128xf32> -> vector<8x128xf32>
    %c0_9 = arith.constant 0 : index
    %c0_10 = arith.constant 0 : index
    %14 = vector.load %arg5[%c0_9, %c0_10] : memref<1x128xf32, #tpu.memory_space<vmem>>, vector<1x128xf32>
    %15 = vector.broadcast %14 : vector<1x128xf32> to vector<8x128xf32>
    %16 = arith.addf %13, %15 : vector<8x128xf32>
    %cst_11 = arith.constant 0.000000e+00 : f32
    %17 = vector.broadcast %cst_11 : f32 to vector<8x128xf32>
    %18 = arith.maximumf %16, %17 : vector<8x128xf32>
    %19 = arith.truncf %18 : vector<8x128xf32> to vector<8x128xbf16>
    %c0_12 = arith.constant 0 : index
    %c0_13 = arith.constant 0 : index
    %20 = vector.load %arg6[%c0_12, %c0_13] : memref<128x16xbf16, #tpu.memory_space<vmem>>, vector<128x16xbf16>
    %cst_14 = arith.constant dense<0.000000e+00> : vector<8x16xf32>
    %21 = tpu.matmul %19, %20, %cst_14 {dimension_numbers = #tpu.dot_dimension_numbers<[1], [0], [0], [1], [0, 0, 1, 1], [], []>} : vector<8x128xbf16>, vector<128x16xbf16>, vector<8x16xf32> -> vector<8x16xf32>
    %c0_15 = arith.constant 0 : index
    %c0_16 = arith.constant 0 : index
    %22 = vector.load %arg7[%c0_15, %c0_16] : memref<1x16xf32, #tpu.memory_space<vmem>>, vector<1x16xf32>
    %23 = vector.broadcast %22 : vector<1x16xf32> to vector<8x16xf32>
    %24 = arith.addf %21, %23 : vector<8x16xf32>
    %25 = vector.extract_strided_slice %24 {offsets = [0, 0], sizes = [8, 8], strides = [1, 1]} : vector<8x16xf32> to vector<8x8xf32>
    %26 = vector.extract_strided_slice %24 {offsets = [0, 8], sizes = [8, 8], strides = [1, 1]} : vector<8x16xf32> to vector<8x8xf32>
    %cst_17 = arith.constant -2.000000e+01 : f32
    %cst_18 = arith.constant 2.000000e+00 : f32
    %27 = vector.broadcast %cst_17 : f32 to vector<8x8xf32>
    %28 = arith.maximumf %27, %26 : vector<8x8xf32>
    %29 = vector.broadcast %cst_18 : f32 to vector<8x8xf32>
    %30 = arith.minimumf %29, %28 : vector<8x8xf32>
    %31 = math.exp %30 : vector<8x8xf32>
    %32 = arith.mulf %31, %2 : vector<8x8xf32>
    %33 = arith.addf %25, %32 : vector<8x8xf32>
    %c0_19 = arith.constant 0 : index
    %c0_20 = arith.constant 0 : index
    %34 = vector.load %arg8[%c0_19, %c0_20] : memref<2x8xf32, #tpu.memory_space<vmem>>, vector<1x8xf32>
    %c1 = arith.constant 1 : index
    %c0_21 = arith.constant 0 : index
    %35 = vector.load %arg8[%c1, %c0_21] : memref<2x8xf32, #tpu.memory_space<vmem>>, vector<1x8xf32>
    %36 = tpu.concatenate %33, %25 in 1 : vector<8x8xf32>, vector<8x8xf32> -> vector<8x16xf32>
    %37 = math.tanh %36 : vector<8x16xf32>
    %38 = vector.extract_strided_slice %37 {offsets = [0, 0], sizes = [8, 8], strides = [1, 1]} : vector<8x16xf32> to vector<8x8xf32>
    %39 = vector.extract_strided_slice %37 {offsets = [0, 8], sizes = [8, 8], strides = [1, 1]} : vector<8x16xf32> to vector<8x8xf32>
    %40 = vector.broadcast %34 : vector<1x8xf32> to vector<8x8xf32>
    %41 = arith.mulf %38, %40 : vector<8x8xf32>
    %42 = vector.broadcast %35 : vector<1x8xf32> to vector<8x8xf32>
    %43 = arith.addf %41, %42 : vector<8x8xf32>
    %44 = vector.broadcast %34 : vector<1x8xf32> to vector<8x8xf32>
    %45 = arith.mulf %39, %44 : vector<8x8xf32>
    %46 = vector.broadcast %35 : vector<1x8xf32> to vector<8x8xf32>
    %47 = arith.addf %45, %46 : vector<8x8xf32>
    %cst_22 = arith.constant -5.000000e-01 : f32
    %48 = vector.broadcast %cst_22 : f32 to vector<8x8xf32>
    %49 = arith.mulf %48, %2 : vector<8x8xf32>
    %50 = arith.mulf %49, %2 : vector<8x8xf32>
    %51 = arith.subf %50, %30 : vector<8x8xf32>
    %cst_23 = arith.constant 0.918938517 : f32
    %52 = vector.broadcast %cst_23 : f32 to vector<8x8xf32>
    %53 = arith.subf %51, %52 : vector<8x8xf32>
    %54 = arith.mulf %38, %38 : vector<8x8xf32>
    %cst_24 = arith.constant 1.000000e+00 : f32
    %55 = vector.broadcast %cst_24 : f32 to vector<8x8xf32>
    %56 = arith.subf %55, %54 : vector<8x8xf32>
    %57 = vector.broadcast %34 : vector<1x8xf32> to vector<8x8xf32>
    %58 = arith.mulf %57, %56 : vector<8x8xf32>
    %cst_25 = arith.constant 9.99999997E-7 : f32
    %59 = vector.broadcast %cst_25 : f32 to vector<8x8xf32>
    %60 = arith.addf %58, %59 : vector<8x8xf32>
    %61 = math.log %60 : vector<8x8xf32>
    %62 = arith.subf %53, %61 : vector<8x8xf32>
    %cst_26 = arith.constant dense<0.000000e+00> : vector<8xf32>
    %63 = vector.multi_reduction <add>, %62, %cst_26 [1] : vector<8x8xf32> to vector<8xf32>
    %64 = vector.shape_cast %63 : vector<8xf32> to vector<8x1xf32>
    %cst_27 = arith.constant 0.000000e+00 : f32
    %65 = vector.broadcast %cst_27 : f32 to vector<8x95xf32>
    %c0_28 = arith.constant 0 : index
    %c33 = arith.constant 33 : index
    %66 = vector.load %arg9[%c0_28, %c33] : memref<8x128xf32, #tpu.memory_space<vmem>>, vector<8x95xf32>
    tpu.vector_store %arg9[%c0_28, %c33], %65 {strides = array<i32>} : memref<8x128xf32, #tpu.memory_space<vmem>>, vector<8x95xf32>,
    %c0_29 = arith.constant 0 : index
    %c0_30 = arith.constant 0 : index
    %67 = vector.load %arg9[%c0_29, %c0_30] : memref<8x128xf32, #tpu.memory_space<vmem>>, vector<8x8xf32>
    tpu.vector_store %arg9[%c0_29, %c0_30], %43 {strides = array<i32>} : memref<8x128xf32, #tpu.memory_space<vmem>>, vector<8x8xf32>,
    %c0_31 = arith.constant 0 : index
    %c8 = arith.constant 8 : index
    %68 = vector.load %arg9[%c0_31, %c8] : memref<8x128xf32, #tpu.memory_space<vmem>>, vector<8x8xf32>
    tpu.vector_store %arg9[%c0_31, %c8], %47 {strides = array<i32>} : memref<8x128xf32, #tpu.memory_space<vmem>>, vector<8x8xf32>,
    %c0_32 = arith.constant 0 : index
    %c16 = arith.constant 16 : index
    %69 = vector.load %arg9[%c0_32, %c16] : memref<8x128xf32, #tpu.memory_space<vmem>>, vector<8x8xf32>
    tpu.vector_store %arg9[%c0_32, %c16], %31 {strides = array<i32>} : memref<8x128xf32, #tpu.memory_space<vmem>>, vector<8x8xf32>,
    %c0_33 = arith.constant 0 : index
    %c24 = arith.constant 24 : index
    %70 = vector.load %arg9[%c0_33, %c24] : memref<8x128xf32, #tpu.memory_space<vmem>>, vector<8x8xf32>
    tpu.vector_store %arg9[%c0_33, %c24], %33 {strides = array<i32>} : memref<8x128xf32, #tpu.memory_space<vmem>>, vector<8x8xf32>,
    %c0_34 = arith.constant 0 : index
    %c32 = arith.constant 32 : index
    %71 = vector.load %arg9[%c0_34, %c32] : memref<8x128xf32, #tpu.memory_space<vmem>>, vector<8x1xf32>
    tpu.vector_store %arg9[%c0_34, %c32], %64 {strides = array<i32>} : memref<8x128xf32, #tpu.memory_space<vmem>>, vector<8x1xf32>,
    return
  }
  func.func @transform_0(%arg0: i32) -> (i32, i32) {
    %c0_i32 = arith.constant 0 : i32
    %c0_i32_0 = arith.constant 0 : i32
    return %arg0, %c0_i32 : i32, i32
  }
  func.func @transform_1(%arg0: i32) -> (i32, i32) {
    %c0_i32 = arith.constant 0 : i32
    %c0_i32_0 = arith.constant 0 : i32
    %c0_i32_1 = arith.constant 0 : i32
    return %c0_i32, %c0_i32_0 : i32, i32
  }
  func.func @transform_2(%arg0: i32) -> (i32, i32) {
    %c0_i32 = arith.constant 0 : i32
    %c0_i32_0 = arith.constant 0 : i32
    %c0_i32_1 = arith.constant 0 : i32
    return %c0_i32, %c0_i32_0 : i32, i32
  }
  func.func @transform_3(%arg0: i32) -> (i32, i32) {
    %c0_i32 = arith.constant 0 : i32
    %c0_i32_0 = arith.constant 0 : i32
    %c0_i32_1 = arith.constant 0 : i32
    return %c0_i32, %c0_i32_0 : i32, i32
  }
  func.func @transform_4(%arg0: i32) -> (i32, i32) {
    %c0_i32 = arith.constant 0 : i32
    %c0_i32_0 = arith.constant 0 : i32
    %c0_i32_1 = arith.constant 0 : i32
    return %c0_i32, %c0_i32_0 : i32, i32
  }
  func.func @transform_5(%arg0: i32) -> (i32, i32) {
    %c0_i32 = arith.constant 0 : i32
    %c0_i32_0 = arith.constant 0 : i32
    %c0_i32_1 = arith.constant 0 : i32
    return %c0_i32, %c0_i32_0 : i32, i32
  }
  func.func @transform_6(%arg0: i32) -> (i32, i32) {
    %c0_i32 = arith.constant 0 : i32
    %c0_i32_0 = arith.constant 0 : i32
    %c0_i32_1 = arith.constant 0 : i32
    return %c0_i32, %c0_i32_0 : i32, i32
  }
  func.func @transform_7(%arg0: i32) -> (i32, i32) {
    %c0_i32 = arith.constant 0 : i32
    %c0_i32_0 = arith.constant 0 : i32
    %c0_i32_1 = arith.constant 0 : i32
    return %c0_i32, %c0_i32_0 : i32, i32
  }
  func.func @transform_8(%arg0: i32) -> (i32, i32) {
    %c0_i32 = arith.constant 0 : i32
    %c0_i32_0 = arith.constant 0 : i32
    return %arg0, %c0_i32 : i32, i32
  }
}

</mosaic_0001>

<llo_original>
// kernel: tpu_custom_call.1
$region0: #{tpu_custom_call.1}
  #allocation0 [shape = 'u32[]', space=smem, size = 0x4, offset = 0x4, fixed_abs, tag = 'smem constant byte address 0x4 - core index']
  #allocation1 [shape = 'u32[144,128]{1,0:T(1,128)}', space=vmem, size = 0x12000, scoped, tag = 'internal scratch']
  %s0 = inlined_call_operand.vmem [shape: f32[8,24], index: 0, kind: input, shape index: {}]
  %s1 = inlined_call_operand.hbm [shape: bf16[16,128], index: 1, kind: input, shape index: {}]
  %s2 = inlined_call_operand.vmem [shape: f32[1,128], index: 2, kind: input, shape index: {}]
  %s3 = inlined_call_operand.vmem [shape: bf16[128,128], index: 3, kind: input, shape index: {}]
  %s4 = inlined_call_operand.vmem [shape: f32[1,128], index: 4, kind: input, shape index: {}]
  %s5 = inlined_call_operand.vmem [shape: bf16[128,16], index: 5, kind: input, shape index: {}]
  %s6 = inlined_call_operand.vmem [shape: f32[1,16], index: 6, kind: input, shape index: {}]
  %s7 = inlined_call_operand.vmem [shape: f32[2,8], index: 7, kind: input, shape index: {}]
  %s8 = inlined_call_operand.hbm [shape: f32[8,128], index: 8, kind: output, shape index: {}]
  %s9 = sld [smem:[#allocation0]]
  $region46: #{tpu_custom_call.1} parent=0
    _
  %s11 = ssub.s32 1, %s9
  %s12 = scalar_select 0, %s11, %s9
  $region1: #{tpu_custom_call.1} parent=0
    #allocation2 [shape = 'u8[4096]{0}', space=vmem, size = 0x1000, scoped, tag = 'input window, operand 1, single buffered']
    #allocation3 [shape = 's32[1]{0}', space=sflag, size = 0x4, scoped, tag = 'scoped memory for tpu_custom_call.1']
    #allocation4 [shape = 's32[1]{0}', space=sflag, size = 0x4, scoped, tag = 'scoped memory for tpu_custom_call.1']
    #allocation5 [shape = 'u8[4096]{0}', space=vmem, size = 0x1000, scoped, tag = 'output window, operand 0, single buffered']
    %13 = vsyncpa [#allocation3], 0
    %14 = vsyncpa [#allocation4], 0
    // Predicated region
    $region2: #{tpu_custom_call.1} parent=1 // pred_check
      _
    $region3: #{tpu_custom_call.1} parent=1 // pred_check_branch
      %16 = sbr.rel (0) target = $region5
    $region4: #{tpu_custom_call.1} parent=1 // pred_region
      _
    $region5: #{tpu_custom_call.1} parent=1 // pred_fallthru
      _
    // Predicated region
    $region6: #{tpu_custom_call.1} parent=1 // pred_check
      _
    $region7: #{tpu_custom_call.1} parent=1 // pred_check_branch
      %18 = sbr.rel (0) target = $region9
    $region8: #{tpu_custom_call.1} parent=1 // pred_region
      %s20 = ssub.s32 128, 128
      %21 = vsyncadd [#allocation3], %s20
      %s22 = sshll.u32 [#allocation2], 4
      %s23 = int_to_ptr.vmem [resolvable:$true] %s22
      %28 = dma.hbm_to_vmem [thread:$0]  %s1, 128, %s23, [#allocation3], 64, 64, 4
    $region9: #{tpu_custom_call.1} parent=1 // pred_fallthru
      _
    // Predicated region
    $region10: #{tpu_custom_call.1} parent=1 // pred_check
      _
    $region11: #{tpu_custom_call.1} parent=1 // pred_check_branch
      %30 = sbr.rel (0) target = $region13
    $region12: #{tpu_custom_call.1} parent=1 // pred_region
      _
    $region13: #{tpu_custom_call.1} parent=1 // pred_fallthru
      _
    // Predicated region
    $region14: #{tpu_custom_call.1} parent=1 // pred_check
      _
    $region15: #{tpu_custom_call.1} parent=1 // pred_check_branch
      %32 = sbr.rel (0) target = $region17
    $region16: #{tpu_custom_call.1} parent=1 // pred_region
      _
    $region17: #{tpu_custom_call.1} parent=1 // pred_fallthru
      _
    // Predicated region
    $region18: #{tpu_custom_call.1} parent=1 // pred_check
      _
    $region19: #{tpu_custom_call.1} parent=1 // pred_check_branch
      %34 = sbr.rel (0) target = $region21
    $region20: #{tpu_custom_call.1} parent=1 // pred_region
      _
    $region21: #{tpu_custom_call.1} parent=1 // pred_fallthru
      _
    // Predicated region
    $region22: #{tpu_custom_call.1} parent=1 // pred_check
      _
    $region23: #{tpu_custom_call.1} parent=1 // pred_check_branch
      %36 = sbr.rel (0) target = $region25
    $region24: #{tpu_custom_call.1} parent=1 // pred_region
      _
    $region25: #{tpu_custom_call.1} parent=1 // pred_fallthru
      _
    // Predicated region
    $region26: #{tpu_custom_call.1} parent=1 // pred_check
      _
    $region27: #{tpu_custom_call.1} parent=1 // pred_check_branch
      %38 = sbr.rel (0) target = $region29
    $region28: #{tpu_custom_call.1} parent=1 // pred_region
      _
    $region29: #{tpu_custom_call.1} parent=1 // pred_fallthru
      _
    // Predicated region
    $region30: #{tpu_custom_call.1} parent=1 // pred_check
      _
    $region31: #{tpu_custom_call.1} parent=1 // pred_check_branch
      %40 = sbr.rel (0) target = $region33
    $region32: #{tpu_custom_call.1} parent=1 // pred_region
      _
    $region33: #{tpu_custom_call.1} parent=1 // pred_fallthru
      _
    // Predicated region
    $region34: #{tpu_custom_call.1} parent=1 // pred_check
      _
    $region35: #{tpu_custom_call.1} parent=1 // pred_check_branch
      %42 = sbr.rel (0) target = $region37
    $region36: #{tpu_custom_call.1} parent=1 // pred_region
      %43 = dma.done [#allocation3], 128
    $region37: #{tpu_custom_call.1} parent=1 // pred_fallthru
      _
    %v45 = vld [vmem:[%s0] sm:$0xff]
    %v46 = vpack.c.bf16 %v45, %v45
    %v47 = vld [vmem:[#allocation2] sm:$0xf]
    %v48 = vld [vmem:[#allocation2 + $0x4] sm:$0xf]
    %v49 = vld [vmem:[%s2] sm:$0x1]
    %v51 = vlaneseq
    %v52 = vshrl.u32 %v51, 7
    %v53 = vsub.s32 0, %v52
    %v54 = vrot.slane %v49, %v53
    %v58 = vunpack.c.l.b16 %v47
    %v59 = vunpack.c.l.b16 %v48
    %v60 = vpack.c.b16 %v59, %v58
    %vm62 = vcmask 130048
    %v64 = vsel %vm62, %v46, 0
    %66 = vmatprep.subr.bf16.mxu0 0
    %67 = vmatpush1.bf16.msra.mxu0 %v60
    %68 = vmatprep.subr.bf16.mxu0 0
    %69 = vmatpush1.bf16.msra.mxu0 0
    %70 = vmatprep.subr.bf16.mxu0 0
    %71 = vmatpush1.bf16.msra.mxu0 0
    %72 = vmatprep.subr.bf16.mxu0 0
    %73 = vmatpush1.bf16.msra.mxu0 0
    %74 = vmatprep.subr.bf16.mxu0 0
    %75 = vmatpush1.bf16.msra.mxu0 0
    %76 = vmatprep.subr.bf16.mxu0 0
    %77 = vmatpush1.bf16.msra.mxu0 0
    %78 = vmatprep.subr.bf16.mxu0 0
    %79 = vmatpush1.bf16.msra.mxu0 0
    %80 = vmatprep.subr.bf16.mxu0 0
    %81 = vmatpush1.bf16.msra.mxu0 0
    %82 = vmatprep.subr.bf16.mxu0 0
    %83 = vmatpush1.bf16.msra.mxu0 0
    %84 = vmatprep.subr.bf16.mxu0 0
    %85 = vmatpush1.bf16.msra.mxu0 0
    %86 = vmatprep.subr.bf16.mxu0 0
    %87 = vmatpush1.bf16.msra.mxu0 0
    %88 = vmatprep.subr.bf16.mxu0 0
    %89 = vmatpush1.bf16.msra.mxu0 0
    %90 = vmatprep.subr.bf16.mxu0 0
    %91 = vmatpush1.bf16.msra.mxu0 0
    %92 = vmatprep.subr.bf16.mxu0 0
    %93 = vmatpush1.bf16.msra.mxu0 0
    %94 = vmatprep.subr.bf16.mxu0 0
    %95 = vmatpush1.bf16.msra.mxu0 0
    %96 = vmatprep.subr.bf16.mxu0 0
    %97 = vmatpush1.bf16.msra.mxu0 0
    %98 = vmatprep.mubr.bf16.mxu0 0
    %99 = vmatmul.mubr.bf16.gmra.mrb[0].mxu0 %v64
    %v100 = vpop.f32.mrb[0].mxu0
    %v101 = vadd.f32 %v54, %v100
    %v102 = vpop.f32.mrb[0].mxu0
    %v103 = vpop.f32.mrb[0].mxu0
    %v104 = vpop.f32.mrb[0].mxu0
    %105 = vdwg.mxu0
    %v106 = vmax.f32 %v101, 0.0
    %v107 = vpack.c.bf16 %v106, %v106
    %v108 = vld [vmem:[%s3] sm:$0xf]
    %v109 = vld [vmem:[%s3 + $0x4] sm:$0xf]
    %v110 = vld [vmem:[%s3 + $0x8] sm:$0xf]
    %v111 = vld [vmem:[%s3 + $0xc] sm:$0xf]
    %v112 = vld [vmem:[%s3 + $0x10] sm:$0xf]
    %v113 = vld [vmem:[%s3 + $0x14] sm:$0xf]
    %v114 = vld [vmem:[%s3 + $0x18] sm:$0xf]
    %v115 = vld [vmem:[%s3 + $0x1c] sm:$0xf]
    %v116 = vld [vmem:[%s3 + $0x20] sm:$0xf]
    %v117 = vld [vmem:[%s3 + $0x24] sm:$0xf]
    %v118 = vld [vmem:[%s3 + $0x28] sm:$0xf]
    %v119 = vld [vmem:[%s3 + $0x2c] sm:$0xf]
    %v120 = vld [vmem:[%s3 + $0x30] sm:$0xf]
    %v121 = vld [vmem:[%s3 + $0x34] sm:$0xf]
    %v122 = vld [vmem:[%s3 + $0x38] sm:$0xf]
    %v123 = vld [vmem:[%s3 + $0x3c] sm:$0xf]
    %v124 = vld [vmem:[%s4] sm:$0x1]
    %v126 = vlaneseq
    %v127 = vshrl.u32 %v126, 7
    %v128 = vsub.s32 0, %v127
    %v129 = vrot.slane %v124, %v128
    %v147 = vunpack.c.l.b16 %v108
    %v148 = vunpack.c.l.b16 %v109
    %v149 = vunpack.c.l.b16 %v110
    %v150 = vunpack.c.l.b16 %v111
    %v151 = vunpack.c.l.b16 %v112
    %v152 = vunpack.c.l.b16 %v113
    %v153 = vunpack.c.l.b16 %v114
    %v154 = vunpack.c.l.b16 %v115
    %v155 = vunpack.c.l.b16 %v116
    %v156 = vunpack.c.l.b16 %v117
    %v157 = vunpack.c.l.b16 %v118
    %v158 = vunpack.c.l.b16 %v119
    %v159 = vunpack.c.l.b16 %v120
    %v160 = vunpack.c.l.b16 %v121
    %v161 = vunpack.c.l.b16 %v122
    %v162 = vunpack.c.l.b16 %v123
    %v163 = vpack.c.b16 %v148, %v147
    %v164 = vpack.c.b16 %v150, %v149
    %v165 = vpack.c.b16 %v152, %v151
    %v166 = vpack.c.b16 %v154, %v153
    %v167 = vpack.c.b16 %v156, %v155
    %v168 = vpack.c.b16 %v158, %v157
    %v169 = vpack.c.b16 %v160, %v159
    %v170 = vpack.c.b16 %v162, %v161
    %179 = vmatprep.subr.bf16.mxu0 0
    %180 = vmatpush1.bf16.msra.mxu0 %v163
    %181 = vmatprep.subr.bf16.mxu0 0
    %182 = vmatpush1.bf16.msra.mxu0 %v164
    %183 = vmatprep.subr.bf16.mxu0 0
    %184 = vmatpush1.bf16.msra.mxu0 %v165
    %185 = vmatprep.subr.bf16.mxu0 0
    %186 = vmatpush1.bf16.msra.mxu0 %v166
    %187 = vmatprep.subr.bf16.mxu0 0
    %188 = vmatpush1.bf16.msra.mxu0 %v167
    %189 = vmatprep.subr.bf16.mxu0 0
    %190 = vmatpush1.bf16.msra.mxu0 %v168
    %191 = vmatprep.subr.bf16.mxu0 0
    %192 = vmatpush1.bf16.msra.mxu0 %v169
    %193 = vmatprep.subr.bf16.mxu0 0
    %194 = vmatpush1.bf16.msra.mxu0 %v170
    %195 = vmatprep.subr.bf16.mxu0 0
    %196 = vmatpush1.bf16.msra.mxu0 0
    %197 = vmatprep.subr.bf16.mxu0 0
    %198 = vmatpush1.bf16.msra.mxu0 0
    %199 = vmatprep.subr.bf16.mxu0 0
    %200 = vmatpush1.bf16.msra.mxu0 0
    %201 = vmatprep.subr.bf16.mxu0 0
    %202 = vmatpush1.bf16.msra.mxu0 0
    %203 = vmatprep.subr.bf16.mxu0 0
    %204 = vmatpush1.bf16.msra.mxu0 0
    %205 = vmatprep.subr.bf16.mxu0 0
    %206 = vmatpush1.bf16.msra.mxu0 0
    %207 = vmatprep.subr.bf16.mxu0 0
    %208 = vmatpush1.bf16.msra.mxu0 0
    %209 = vmatprep.subr.bf16.mxu0 0
    %210 = vmatpush1.bf16.msra.mxu0 0
    %211 = vmatprep.mubr.bf16.mxu0 0
    %212 = vmatmul.mubr.bf16.gmra.mrb[0].mxu0 %v107
    %v213 = vpop.f32.mrb[0].mxu0
    %v214 = vadd.f32 %v129, %v213
    %v215 = vpop.f32.mrb[0].mxu0
    %v216 = vpop.f32.mrb[0].mxu0
    %v217 = vpop.f32.mrb[0].mxu0
    %218 = vdwg.mxu0
    %v219 = vmax.f32 %v214, 0.0
    %v220 = vpack.c.bf16 %v219, %v219
    %v221 = vld [vmem:[%s5] sm:$0xf]
    %v222 = vld [vmem:[%s5 + $0x4] sm:$0xf]
    %v223 = vld [vmem:[%s5 + $0x8] sm:$0xf]
    %v224 = vld [vmem:[%s5 + $0xc] sm:$0xf]
    %v225 = vld [vmem:[%s5 + $0x10] sm:$0xf]
    %v226 = vld [vmem:[%s5 + $0x14] sm:$0xf]
    %v227 = vld [vmem:[%s5 + $0x18] sm:$0xf]
    %v228 = vld [vmem:[%s5 + $0x1c] sm:$0xf]
    %v229 = vld [vmem:[%s5 + $0x20] sm:$0xf]
    %v230 = vld [vmem:[%s5 + $0x24] sm:$0xf]
    %v231 = vld [vmem:[%s5 + $0x28] sm:$0xf]
    %v232 = vld [vmem:[%s5 + $0x2c] sm:$0xf]
    %v233 = vld [vmem:[%s5 + $0x30] sm:$0xf]
    %v234 = vld [vmem:[%s5 + $0x34] sm:$0xf]
    %v235 = vld [vmem:[%s5 + $0x38] sm:$0xf]
    %v236 = vld [vmem:[%s5 + $0x3c] sm:$0xf]
    %v237 = vld [vmem:[%s6] sm:$0x1]
    %v239 = vlaneseq
    %v240 = vshrl.u32 %v239, 7
    %v241 = vsub.s32 0, %v240
    %v242 = vrot.slane %v237, %v241
    %v260 = vunpack.c.l.b16 %v221
    %v261 = vunpack.c.l.b16 %v222
    %v262 = vunpack.c.l.b16 %v223
    %v263 = vunpack.c.l.b16 %v224
    %v264 = vunpack.c.l.b16 %v225
    %v265 = vunpack.c.l.b16 %v226
    %v266 = vunpack.c.l.b16 %v227
    %v267 = vunpack.c.l.b16 %v228
    %v268 = vunpack.c.l.b16 %v229
    %v269 = vunpack.c.l.b16 %v230
    %v270 = vunpack.c.l.b16 %v231
    %v271 = vunpack.c.l.b16 %v232
    %v272 = vunpack.c.l.b16 %v233
    %v273 = vunpack.c.l.b16 %v234
    %v274 = vunpack.c.l.b16 %v235
    %v275 = vunpack.c.l.b16 %v236
    %v276 = vpack.c.b16 %v261, %v260
    %v277 = vpack.c.b16 %v263, %v262
    %v278 = vpack.c.b16 %v265, %v264
    %v279 = vpack.c.b16 %v267, %v266
    %v280 = vpack.c.b16 %v269, %v268
    %v281 = vpack.c.b16 %v271, %v270
    %v282 = vpack.c.b16 %v273, %v272
    %v283 = vpack.c.b16 %v275, %v274
    %292 = vmatprep.subr.bf16.mxu0 0
    %293 = vmatpush1.bf16.msra.mxu0 %v276
    %294 = vmatprep.subr.bf16.mxu0 0
    %295 = vmatpush1.bf16.msra.mxu0 %v277
    %296 = vmatprep.subr.bf16.mxu0 0
    %297 = vmatpush1.bf16.msra.mxu0 %v278
    %298 = vmatprep.subr.bf16.mxu0 0
    %299 = vmatpush1.bf16.msra.mxu0 %v279
    %300 = vmatprep.subr.bf16.mxu0 0
    %301 = vmatpush1.bf16.msra.mxu0 %v280
    %302 = vmatprep.subr.bf16.mxu0 0
    %303 = vmatpush1.bf16.msra.mxu0 %v281
    %304 = vmatprep.subr.bf16.mxu0 0
    %305 = vmatpush1.bf16.msra.mxu0 %v282
    %306 = vmatprep.subr.bf16.mxu0 0
    %307 = vmatpush1.bf16.msra.mxu0 %v283
    %308 = vmatprep.subr.bf16.mxu0 0
    %309 = vmatpush1.bf16.msra.mxu0 0
    %310 = vmatprep.subr.bf16.mxu0 0
    %311 = vmatpush1.bf16.msra.mxu0 0
    %312 = vmatprep.subr.bf16.mxu0 0
    %313 = vmatpush1.bf16.msra.mxu0 0
    %314 = vmatprep.subr.bf16.mxu0 0
    %315 = vmatpush1.bf16.msra.mxu0 0
    %316 = vmatprep.subr.bf16.mxu0 0
    %317 = vmatpush1.bf16.msra.mxu0 0
    %318 = vmatprep.subr.bf16.mxu0 0
    %319 = vmatpush1.bf16.msra.mxu0 0
    %320 = vmatprep.subr.bf16.mxu0 0
    %321 = vmatpush1.bf16.msra.mxu0 0
    %322 = vmatprep.subr.bf16.mxu0 0
    %323 = vmatpush1.bf16.msra.mxu0 0
    %324 = vmatprep.mubr.bf16.mxu0 0
    %325 = vmatmul.mubr.bf16.gmra.mrb[0].mxu0 %v220
    %v326 = vpop.f32.mrb[0].mxu0
    %v327 = vadd.f32 %v242, %v326
    %v328 = vpop.f32.mrb[0].mxu0
    %v329 = vpop.f32.mrb[0].mxu0
    %v330 = vpop.f32.mrb[0].mxu0
    %331 = vdwg.mxu0
    %v332 = vmax.f32 %v327, -20.0
    %v333 = vmin.f32 %v332, 2.0
    %v334 = vmul.f32 %v333, 1.442695
    %v335 = vpow.pop %v334
    %337 = vrot.lane.b32.xlu0 %v45, 120
    %v338 = vpop.permute.xlu0 %337
    %v340 = vmul.f32 %v335, %v338
    %342 = vrot.lane.b32.xlu0 %v340, 120
    %v343 = vpop.permute.xlu0 %342
    %v345 = vadd.f32 %v327, %v343
    %v346 = vld [vmem:[%s7] sm:$0x1]
    %v347 = vld [vmem:[%s7 + $0x1] sm:$0x1]
    %349 = vrot.lane.b32.xlu0 %v327, 8
    %v350 = vpop.permute.xlu0 %349
    %vm352 = vcmask 64512
    %v353 = vsel %vm352, %v345, %v350
    %v354 = vtanh.pop %v353
    %v355 = vlaneseq
    %v356 = vshrl.u32 %v355, 7
    %v357 = vsub.s32 0, %v356
    %v358 = vrot.slane %v346, %v357
    %v359 = vmul.f32 %v354, %v358
    %v360 = vlaneseq
    %v361 = vshrl.u32 %v360, 7
    %v362 = vsub.s32 0, %v361
    %v363 = vrot.slane %v347, %v362
    %v364 = vadd.f32 %v359, %v363
    %366 = vrot.lane.b32.xlu0 %v358, 8
    %v367 = vpop.permute.xlu0 %366
    %v369 = vmul.f32 %v354, %v367
    %371 = vrot.lane.b32.xlu0 %v363, 8
    %v372 = vpop.permute.xlu0 %371
    %v374 = vadd.f32 %v369, %v372
    %v375 = vmul.f32 %v45, -0.5
    %v376 = vmul.f32 %v375, %v45
    %378 = vrot.lane.b32.xlu0 %v333, 8
    %v379 = vpop.permute.xlu0 %378
    %v381 = vsub.f32 %v376, %v379
    %v382 = vsub.f32 %v381, 0.9189385
    %v383 = vmul.f32 %v354, %v354
    %v384 = vsub.f32 1.0, %v383
    %v385 = vmul.f32 %v358, %v384
    %v386 = vadd.f32 %v385, 1e-06
    %v387 = vlog2.pop %v386
    %v388 = vmul.f32 %v387, 0.6931472
    %390 = vrot.lane.b32.xlu0 %v388, 16
    %v391 = vpop.permute.xlu0 %390
    %v393 = vsub.f32 %v382, %v391
    %395 = vrot.lane.b32.xlu0 %v393, 112
    %v396 = vpop.permute.xlu0 %395
    %v398 = vsel %vm352, %v396, 0.0
    %399 = vadd.xlane.f32.xlu0 %v398
    %v400 = vpop.xlane.xlu0 %399
    %vm401 = vcmask 1047816
    %402 = vst.msk [vmem:[#allocation5] sm:$0xff] %vm401, 0.0
    %403 = vst.msk [vmem:[#allocation5] sm:$0xff] %vm352, %v364
    %vm404 = vcmask 130112
    %405 = vst.msk [vmem:[#allocation5] sm:$0xff] %vm404, %v374
    %407 = vrot.lane.b32.xlu0 %v335, 8
    %v408 = vpop.permute.xlu0 %407
    %vm410 = vcmask 195712
    %411 = vst.msk [vmem:[#allocation5] sm:$0xff] %vm410, %v408
    %413 = vrot.lane.b32.xlu0 %v345, 24
    %v414 = vpop.permute.xlu0 %413
    %vm416 = vcmask 261312
    %417 = vst.msk [vmem:[#allocation5] sm:$0xff] %vm416, %v414
    %vm418 = vcmask 269568
    %419 = vst.msk [vmem:[#allocation5] sm:$0xff] %vm418, %v400
    // Predicated region
    $region38: #{tpu_custom_call.1} parent=1 // pred_check
      _
    $region39: #{tpu_custom_call.1} parent=1 // pred_check_branch
      %421 = sbr.rel (0) target = $region41
    $region40: #{tpu_custom_call.1} parent=1 // pred_region
      %s423 = ssub.s32 128, 128
      %424 = vsyncadd [#allocation4], %s423
      %s426 = sshll.u32 [#allocation5], 4
      %s427 = int_to_ptr.vmem [resolvable:$true] %s426
      %429 = dma.vmem_to_hbm [thread:$0]  %s427, 128, %s8, [#allocation4]
    $region41: #{tpu_custom_call.1} parent=1 // pred_fallthru
      _
    // Predicated region
    $region42: #{tpu_custom_call.1} parent=1 // pred_check
      _
    $region43: #{tpu_custom_call.1} parent=1 // pred_check_branch
      %431 = sbr.rel (0) target = $region45
    $region44: #{tpu_custom_call.1} parent=1 // pred_region
      %432 = dma.done [#allocation4], 128
    $region45: #{tpu_custom_call.1} parent=1 // pred_fallthru
      _
    %433 = vsyncpa [#allocation3], 1
    %434 = vsyncpa [#allocation4], 1

// kernel: tpu_custom_call.1
$region0: #{tpu_custom_call.1}
  #allocation0 [shape = 'u32[]', space=smem, size = 0x4, offset = 0x4, fixed_abs, tag = 'smem constant byte address 0x4 - core index']
  #allocation1 [shape = 'u32[144,128]{1,0:T(1,128)}', space=vmem, size = 0x12000, scoped, tag = 'internal scratch']
  %s0 = inlined_call_operand.vmem [shape: f32[8,24], index: 0, kind: input, shape index: {}]
  %s1 = inlined_call_operand.hbm [shape: bf16[16,128], index: 1, kind: input, shape index: {}]
  %s2 = inlined_call_operand.vmem [shape: f32[1,128], index: 2, kind: input, shape index: {}]
  %s3 = inlined_call_operand.vmem [shape: bf16[128,128], index: 3, kind: input, shape index: {}]
  %s4 = inlined_call_operand.vmem [shape: f32[1,128], index: 4, kind: input, shape index: {}]
  %s5 = inlined_call_operand.vmem [shape: bf16[128,16], index: 5, kind: input, shape index: {}]
  %s6 = inlined_call_operand.vmem [shape: f32[1,16], index: 6, kind: input, shape index: {}]
  %s7 = inlined_call_operand.vmem [shape: f32[2,8], index: 7, kind: input, shape index: {}]
  %s8 = inlined_call_operand.hbm [shape: f32[8,128], index: 8, kind: output, shape index: {}]
  %s9 = sld [smem:[#allocation0]]
  $region46: #{tpu_custom_call.1} parent=0
    _
  %s11 = ssub.s32 1, %s9
  %s12 = scalar_select 0, %s11, %s9
  $region1: #{tpu_custom_call.1} parent=0
    #allocation2 [shape = 'u8[4096]{0}', space=vmem, size = 0x1000, scoped, tag = 'input window, operand 1, single buffered']
    #allocation3 [shape = 's32[1]{0}', space=sflag, size = 0x4, scoped, tag = 'scoped memory for tpu_custom_call.1']
    #allocation4 [shape = 's32[1]{0}', space=sflag, size = 0x4, scoped, tag = 'scoped memory for tpu_custom_call.1']
    #allocation5 [shape = 'u8[4096]{0}', space=vmem, size = 0x1000, scoped, tag = 'output window, operand 0, single buffered']
    %13 = vsyncpa [#allocation3], 0
    %14 = vsyncpa [#allocation4], 0
    // Predicated region
    $region2: #{tpu_custom_call.1} parent=1 // pred_check
      _
    $region3: #{tpu_custom_call.1} parent=1 // pred_check_branch
      %16 = sbr.rel (0) target = $region5
    $region4: #{tpu_custom_call.1} parent=1 // pred_region
      _
    $region5: #{tpu_custom_call.1} parent=1 // pred_fallthru
      _
    // Predicated region
    $region6: #{tpu_custom_call.1} parent=1 // pred_check
      _
    $region7: #{tpu_custom_call.1} parent=1 // pred_check_branch
      %18 = sbr.rel (0) target = $region9
    $region8: #{tpu_custom_call.1} parent=1 // pred_region
      %s20 = ssub.s32 128, 128
      %21 = vsyncadd [#allocation3], %s20
      %s22 = sshll.u32 [#allocation2], 4
      %s23 = int_to_ptr.vmem [resolvable:$true] %s22
      %28 = dma.hbm_to_vmem [thread:$0]  %s1, 128, %s23, [#allocation3], 64, 64, 4
    $region9: #{tpu_custom_call.1} parent=1 // pred_fallthru
      _
    // Predicated region
    $region10: #{tpu_custom_call.1} parent=1 // pred_check
      _
    $region11: #{tpu_custom_call.1} parent=1 // pred_check_branch
      %30 = sbr.rel (0) target = $region13
    $region12: #{tpu_custom_call.1} parent=1 // pred_region
      _
    $region13: #{tpu_custom_call.1} parent=1 // pred_fallthru
      _
    // Predicated region
    $region14: #{tpu_custom_call.1} parent=1 // pred_check
      _
    $region15: #{tpu_custom_call.1} parent=1 // pred_check_branch
      %32 = sbr.rel (0) target = $region17
    $region16: #{tpu_custom_call.1} parent=1 // pred_region
      _
    $region17: #{tpu_custom_call.1} parent=1 // pred_fallthru
      _
    // Predicated region
    $region18: #{tpu_custom_call.1} parent=1 // pred_check
      _
    $region19: #{tpu_custom_call.1} parent=1 // pred_check_branch
      %34 = sbr.rel (0) target = $region21
    $region20: #{tpu_custom_call.1} parent=1 // pred_region
      _
    $region21: #{tpu_custom_call.1} parent=1 // pred_fallthru
      _
    // Predicated region
    $region22: #{tpu_custom_call.1} parent=1 // pred_check
      _
    $region23: #{tpu_custom_call.1} parent=1 // pred_check_branch
      %36 = sbr.rel (0) target = $region25
    $region24: #{tpu_custom_call.1} parent=1 // pred_region
      _
    $region25: #{tpu_custom_call.1} parent=1 // pred_fallthru
      _
    // Predicated region
    $region26: #{tpu_custom_call.1} parent=1 // pred_check
      _
    $region27: #{tpu_custom_call.1} parent=1 // pred_check_branch
      %38 = sbr.rel (0) target = $region29
    $region28: #{tpu_custom_call.1} parent=1 // pred_region
      _
    $region29: #{tpu_custom_call.1} parent=1 // pred_fallthru
      _
    // Predicated region
    $region30: #{tpu_custom_call.1} parent=1 // pred_check
      _
    $region31: #{tpu_custom_call.1} parent=1 // pred_check_branch
      %40 = sbr.rel (0) target = $region33
    $region32: #{tpu_custom_call.1} parent=1 // pred_region
      _
    $region33: #{tpu_custom_call.1} parent=1 // pred_fallthru
      _
    // Predicated region
    $region34: #{tpu_custom_call.1} parent=1 // pred_check
      _
    $region35: #{tpu_custom_call.1} parent=1 // pred_check_branch
      %42 = sbr.rel (0) target = $region37
    $region36: #{tpu_custom_call.1} parent=1 // pred_region
      %43 = dma.done [#allocation3], 128
    $region37: #{tpu_custom_call.1} parent=1 // pred_fallthru
      _
    %v45 = vld [vmem:[%s0] sm:$0xff]
    %v46 = vpack.c.bf16 %v45, %v45
    %v47 = vld [vmem:[#allocation2] sm:$0xf]
    %v48 = vld [vmem:[#allocation2 + $0x4] sm:$0xf]
    %v49 = vld [vmem:[%s2] sm:$0x1]
    %v51 = vlaneseq
    %v52 = vshrl.u32 %v51, 7
    %v53 = vsub.s32 0, %v52
    %v54 = vrot.slane %v49, %v53
    %v58 = vunpack.c.l.b16 %v47
    %v59 = vunpack.c.l.b16 %v48
    %v60 = vpack.c.b16 %v59, %v58
    %vm62 = vcmask 130048
    %v64 = vsel %vm62, %v46, 0
    %66 = vmatprep.subr.bf16.mxu0 0
    %67 = vmatpush1.bf16.msra.mxu0 %v60
    %68 = vmatprep.subr.bf16.mxu0 0
    %69 = vmatpush1.bf16.msra.mxu0 0
    %70 = vmatprep.subr.bf16.mxu0 0
    %71 = vmatpush1.bf16.msra.mxu0 0
    %72 = vmatprep.subr.bf16.mxu0 0
    %73 = vmatpush1.bf16.msra.mxu0 0
    %74 = vmatprep.subr.bf16.mxu0 0
    %75 = vmatpush1.bf16.msra.mxu0 0
    %76 = vmatprep.subr.bf16.mxu0 0
    %77 = vmatpush1.bf16.msra.mxu0 0
    %78 = vmatprep.subr.bf16.mxu0 0
    %79 = vmatpush1.bf16.msra.mxu0 0
    %80 = vmatprep.subr.bf16.mxu0 0
    %81 = vmatpush1.bf16.msra.mxu0 0
    %82 = vmatprep.subr.bf16.mxu0 0
    %83 = vmatpush1.bf16.msra.mxu0 0
    %84 = vmatprep.subr.bf16.mxu0 0
    %85 = vmatpush1.bf16.msra.mxu0 0
    %86 = vmatprep.subr.bf16.mxu0 0
    %87 = vmatpush1.bf16.msra.mxu0 0
    %88 = vmatprep.subr.bf16.mxu0 0
    %89 = vmatpush1.bf16.msra.mxu0 0
    %90 = vmatprep.subr.bf16.mxu0 0
    %91 = vmatpush1.bf16.msra.mxu0 0
    %92 = vmatprep.subr.bf16.mxu0 0
    %93 = vmatpush1.bf16.msra.mxu0 0
    %94 = vmatprep.subr.bf16.mxu0 0
    %95 = vmatpush1.bf16.msra.mxu0 0
    %96 = vmatprep.subr.bf16.mxu0 0
    %97 = vmatpush1.bf16.msra.mxu0 0
    %98 = vmatprep.mubr.bf16.mxu0 0
    %99 = vmatmul.mubr.bf16.gmra.mrb[0].mxu0 %v64
    %v100 = vpop.f32.mrb[0].mxu0
    %v101 = vadd.f32 %v54, %v100
    %v102 = vpop.f32.mrb[0].mxu0
    %v103 = vpop.f32.mrb[0].mxu0
    %v104 = vpop.f32.mrb[0].mxu0
    %105 = vdwg.mxu0
    %v106 = vmax.f32 %v101, 0.0
    %v107 = vpack.c.bf16 %v106, %v106
    %v108 = vld [vmem:[%s3] sm:$0xf]
    %v109 = vld [vmem:[%s3 + $0x4] sm:$0xf]
    %v110 = vld [vmem:[%s3 + $0x8] sm:$0xf]
    %v111 = vld [vmem:[%s3 + $0xc] sm:$0xf]
    %v112 = vld [vmem:[%s3 + $0x10] sm:$0xf]
    %v113 = vld [vmem:[%s3 + $0x14] sm:$0xf]
    %v114 = vld [vmem:[%s3 + $0x18] sm:$0xf]
    %v115 = vld [vmem:[%s3 + $0x1c] sm:$0xf]
    %v116 = vld [vmem:[%s3 + $0x20] sm:$0xf]
    %v117 = vld [vmem:[%s3 + $0x24] sm:$0xf]
    %v118 = vld [vmem:[%s3 + $0x28] sm:$0xf]
    %v119 = vld [vmem:[%s3 + $0x2c] sm:$0xf]
    %v120 = vld [vmem:[%s3 + $0x30] sm:$0xf]
    %v121 = vld [vmem:[%s3 + $0x34] sm:$0xf]
    %v122 = vld [vmem:[%s3 + $0x38] sm:$0xf]
    %v123 = vld [vmem:[%s3 + $0x3c] sm:$0xf]
    %v124 = vld [vmem:[%s4] sm:$0x1]
    %v126 = vlaneseq
    %v127 = vshrl.u32 %v126, 7
    %v128 = vsub.s32 0, %v127
    %v129 = vrot.slane %v124, %v128
    %v147 = vunpack.c.l.b16 %v108
    %v148 = vunpack.c.l.b16 %v109
    %v149 = vunpack.c.l.b16 %v110
    %v150 = vunpack.c.l.b16 %v111
    %v151 = vunpack.c.l.b16 %v112
    %v152 = vunpack.c.l.b16 %v113
    %v153 = vunpack.c.l.b16 %v114
    %v154 = vunpack.c.l.b16 %v115
    %v155 = vunpack.c.l.b16 %v116
    %v156 = vunpack.c.l.b16 %v117
    %v157 = vunpack.c.l.b16 %v118
    %v158 = vunpack.c.l.b16 %v119
    %v159 = vunpack.c.l.b16 %v120
    %v160 = vunpack.c.l.b16 %v121
    %v161 = vunpack.c.l.b16 %v122
    %v162 = vunpack.c.l.b16 %v123
    %v163 = vpack.c.b16 %v148, %v147
    %v164 = vpack.c.b16 %v150, %v149
    %v165 = vpack.c.b16 %v152, %v151
    %v166 = vpack.c.b16 %v154, %v153
    %v167 = vpack.c.b16 %v156, %v155
    %v168 = vpack.c.b16 %v158, %v157
    %v169 = vpack.c.b16 %v160, %v159
    %v170 = vpack.c.b16 %v162, %v161
    %179 = vmatprep.subr.bf16.mxu0 0
    %180 = vmatpush1.bf16.msra.mxu0 %v163
    %181 = vmatprep.subr.bf16.mxu0 0
    %182 = vmatpush1.bf16.msra.mxu0 %v164
    %183 = vmatprep.subr.bf16.mxu0 0
    %184 = vmatpush1.bf16.msra.mxu0 %v165
    %185 = vmatprep.subr.bf16.mxu0 0
    %186 = vmatpush1.bf16.msra.mxu0 %v166
    %187 = vmatprep.subr.bf16.mxu0 0
    %188 = vmatpush1.bf16.msra.mxu0 %v167
    %189 = vmatprep.subr.bf16.mxu0 0
    %190 = vmatpush1.bf16.msra.mxu0 %v168
    %191 = vmatprep.subr.bf16.mxu0 0
    %192 = vmatpush1.bf16.msra.mxu0 %v169
    %193 = vmatprep.subr.bf16.mxu0 0
    %194 = vmatpush1.bf16.msra.mxu0 %v170
    %195 = vmatprep.subr.bf16.mxu0 0
    %196 = vmatpush1.bf16.msra.mxu0 0
    %197 = vmatprep.subr.bf16.mxu0 0
    %198 = vmatpush1.bf16.msra.mxu0 0
    %199 = vmatprep.subr.bf16.mxu0 0
    %200 = vmatpush1.bf16.msra.mxu0 0
    %201 = vmatprep.subr.bf16.mxu0 0
    %202 = vmatpush1.bf16.msra.mxu0 0
    %203 = vmatprep.subr.bf16.mxu0 0
    %204 = vmatpush1.bf16.msra.mxu0 0
    %205 = vmatprep.subr.bf16.mxu0 0
    %206 = vmatpush1.bf16.msra.mxu0 0
    %207 = vmatprep.subr.bf16.mxu0 0
    %208 = vmatpush1.bf16.msra.mxu0 0
    %209 = vmatprep.subr.bf16.mxu0 0
    %210 = vmatpush1.bf16.msra.mxu0 0
    %211 = vmatprep.mubr.bf16.mxu0 0
    %212 = vmatmul.mubr.bf16.gmra.mrb[0].mxu0 %v107
    %v213 = vpop.f32.mrb[0].mxu0
    %v214 = vadd.f32 %v129, %v213
    %v215 = vpop.f32.mrb[0].mxu0
    %v216 = vpop.f32.mrb[0].mxu0
    %v217 = vpop.f32.mrb[0].mxu0
    %218 = vdwg.mxu0
    %v219 = vmax.f32 %v214, 0.0
    %v220 = vpack.c.bf16 %v219, %v219
    %v221 = vld [vmem:[%s5] sm:$0xf]
    %v222 = vld [vmem:[%s5 + $0x4] sm:$0xf]
    %v223 = vld [vmem:[%s5 + $0x8] sm:$0xf]
    %v224 = vld [vmem:[%s5 + $0xc] sm:$0xf]
    %v225 = vld [vmem:[%s5 + $0x10] sm:$0xf]
    %v226 = vld [vmem:[%s5 + $0x14] sm:$0xf]
    %v227 = vld [vmem:[%s5 + $0x18] sm:$0xf]
    %v228 = vld [vmem:[%s5 + $0x1c] sm:$0xf]
    %v229 = vld [vmem:[%s5 + $0x20] sm:$0xf]
    %v230 = vld [vmem:[%s5 + $0x24] sm:$0xf]
    %v231 = vld [vmem:[%s5 + $0x28] sm:$0xf]
    %v232 = vld [vmem:[%s5 + $0x2c] sm:$0xf]
    %v233 = vld [vmem:[%s5 + $0x30] sm:$0xf]
    %v234 = vld [vmem:[%s5 + $0x34] sm:$0xf]
    %v235 = vld [vmem:[%s5 + $0x38] sm:$0xf]
    %v236 = vld [vmem:[%s5 + $0x3c] sm:$0xf]
    %v237 = vld [vmem:[%s6] sm:$0x1]
    %v239 = vlaneseq
    %v240 = vshrl.u32 %v239, 7
    %v241 = vsub.s32 0, %v240
    %v242 = vrot.slane %v237, %v241
    %v260 = vunpack.c.l.b16 %v221
    %v261 = vunpack.c.l.b16 %v222
    %v262 = vunpack.c.l.b16 %v223
    %v263 = vunpack.c.l.b16 %v224
    %v264 = vunpack.c.l.b16 %v225
    %v265 = vunpack.c.l.b16 %v226
    %v266 = vunpack.c.l.b16 %v227
    %v267 = vunpack.c.l.b16 %v228
    %v268 = vunpack.c.l.b16 %v229
    %v269 = vunpack.c.l.b16 %v230
    %v270 = vunpack.c.l.b16 %v231
    %v271 = vunpack.c.l.b16 %v232
    %v272 = vunpack.c.l.b16 %v233
    %v273 = vunpack.c.l.b16 %v234
    %v274 = vunpack.c.l.b16 %v235
    %v275 = vunpack.c.l.b16 %v236
    %v276 = vpack.c.b16 %v261, %v260
    %v277 = vpack.c.b16 %v263, %v262
    %v278 = vpack.c.b16 %v265, %v264
    %v279 = vpack.c.b16 %v267, %v266
    %v280 = vpack.c.b16 %v269, %v268
    %v281 = vpack.c.b16 %v271, %v270
    %v282 = vpack.c.b16 %v273, %v272
    %v283 = vpack.c.b16 %v275, %v274
    %292 = vmatprep.subr.bf16.mxu0 0
    %293 = vmatpush1.bf16.msra.mxu0 %v276
    %294 = vmatprep.subr.bf16.mxu0 0
    %295 = vmatpush1.bf16.msra.mxu0 %v277
    %296 = vmatprep.subr.bf16.mxu0 0
    %297 = vmatpush1.bf16.msra.mxu0 %v278
    %298 = vmatprep.subr.bf16.mxu0 0
    %299 = vmatpush1.bf16.msra.mxu0 %v279
    %300 = vmatprep.subr.bf16.mxu0 0
    %301 = vmatpush1.bf16.msra.mxu0 %v280
    %302 = vmatprep.subr.bf16.mxu0 0
    %303 = vmatpush1.bf16.msra.mxu0 %v281
    %304 = vmatprep.subr.bf16.mxu0 0
    %305 = vmatpush1.bf16.msra.mxu0 %v282
    %306 = vmatprep.subr.bf16.mxu0 0
    %307 = vmatpush1.bf16.msra.mxu0 %v283
    %308 = vmatprep.subr.bf16.mxu0 0
    %309 = vmatpush1.bf16.msra.mxu0 0
    %310 = vmatprep.subr.bf16.mxu0 0
    %311 = vmatpush1.bf16.msra.mxu0 0
    %312 = vmatprep.subr.bf16.mxu0 0
    %313 = vmatpush1.bf16.msra.mxu0 0
    %314 = vmatprep.subr.bf16.mxu0 0
    %315 = vmatpush1.bf16.msra.mxu0 0
    %316 = vmatprep.subr.bf16.mxu0 0
    %317 = vmatpush1.bf16.msra.mxu0 0
    %318 = vmatprep.subr.bf16.mxu0 0
    %319 = vmatpush1.bf16.msra.mxu0 0
    %320 = vmatprep.subr.bf16.mxu0 0
    %321 = vmatpush1.bf16.msra.mxu0 0
    %322 = vmatprep.subr.bf16.mxu0 0
    %323 = vmatpush1.bf16.msra.mxu0 0
    %324 = vmatprep.mubr.bf16.mxu0 0
    %325 = vmatmul.mubr.bf16.gmra.mrb[0].mxu0 %v220
    %v326 = vpop.f32.mrb[0].mxu0
    %v327 = vadd.f32 %v242, %v326
    %v328 = vpop.f32.mrb[0].mxu0
    %v329 = vpop.f32.mrb[0].mxu0
    %v330 = vpop.f32.mrb[0].mxu0
    %331 = vdwg.mxu0
    %v332 = vmax.f32 %v327, -20.0
    %v333 = vmin.f32 %v332, 2.0
    %v334 = vmul.f32 %v333, 1.442695
    %v335 = vpow.pop %v334
    %337 = vrot.lane.b32.xlu0 %v45, 120
    %v338 = vpop.permute.xlu0 %337
    %v340 = vmul.f32 %v335, %v338
    %342 = vrot.lane.b32.xlu0 %v340, 120
    %v343 = vpop.permute.xlu0 %342
    %v345 = vadd.f32 %v327, %v343
    %v346 = vld [vmem:[%s7] sm:$0x1]
    %v347 = vld [vmem:[%s7 + $0x1] sm:$0x1]
    %349 = vrot.lane.b32.xlu0 %v327, 8
    %v350 = vpop.permute.xlu0 %349
    %vm352 = vcmask 64512
    %v353 = vsel %vm352, %v345, %v350
    %v354 = vtanh.pop %v353
    %v355 = vlaneseq
    %v356 = vshrl.u32 %v355, 7
    %v357 = vsub.s32 0, %v356
    %v358 = vrot.slane %v346, %v357
    %v359 = vmul.f32 %v354, %v358
    %v360 = vlaneseq
    %v361 = vshrl.u32 %v360, 7
    %v362 = vsub.s32 0, %v361
    %v363 = vrot.slane %v347, %v362
    %v364 = vadd.f32 %v359, %v363
    %366 = vrot.lane.b32.xlu0 %v358, 8
    %v367 = vpop.permute.xlu0 %366
    %v369 = vmul.f32 %v354, %v367
    %371 = vrot.lane.b32.xlu0 %v363, 8
    %v372 = vpop.permute.xlu0 %371
    %v374 = vadd.f32 %v369, %v372
    %v375 = vmul.f32 %v45, -0.5
    %v376 = vmul.f32 %v375, %v45
    %378 = vrot.lane.b32.xlu0 %v333, 8
    %v379 = vpop.permute.xlu0 %378
    %v381 = vsub.f32 %v376, %v379
    %v382 = vsub.f32 %v381, 0.9189385
    %v383 = vmul.f32 %v354, %v354
    %v384 = vsub.f32 1.0, %v383
    %v385 = vmul.f32 %v358, %v384
    %v386 = vadd.f32 %v385, 1e-06
    %v387 = vlog2.pop %v386
    %v388 = vmul.f32 %v387, 0.6931472
    %390 = vrot.lane.b32.xlu0 %v388, 16
    %v391 = vpop.permute.xlu0 %390
    %v393 = vsub.f32 %v382, %v391
    %395 = vrot.lane.b32.xlu0 %v393, 112
    %v396 = vpop.permute.xlu0 %395
    %v398 = vsel %vm352, %v396, 0.0
    %399 = vadd.xlane.f32.xlu0 %v398
    %v400 = vpop.xlane.xlu0 %399
    %vm401 = vcmask 1047816
    %402 = vst.msk [vmem:[#allocation5] sm:$0xff] %vm401, 0.0
    %403 = vst.msk [vmem:[#allocation5] sm:$0xff] %vm352, %v364
    %vm404 = vcmask 130112
    %405 = vst.msk [vmem:[#allocation5] sm:$0xff] %vm404, %v374
    %407 = vrot.lane.b32.xlu0 %v335, 8
    %v408 = vpop.permute.xlu0 %407
    %vm410 = vcmask 195712
    %411 = vst.msk [vmem:[#allocation5] sm:$0xff] %vm410, %v408
    %413 = vrot.lane.b32.xlu0 %v345, 24
    %v414 = vpop.permute.xlu0 %413
    %vm416 = vcmask 261312
    %417 = vst.msk [vmem:[#allocation5] sm:$0xff] %vm416, %v414
    %vm418 = vcmask 269568
    %419 = vst.msk [vmem:[#allocation5] sm:$0xff] %vm418, %v400
    // Predicated region
    $region38: #{tpu_custom_call.1} parent=1 // pred_check
      _
    $region39: #{tpu_custom_call.1} parent=1 // pred_check_branch
      %421 = sbr.rel (0) target = $region41
    $region40: #{tpu_custom_call.1} parent=1 // pred_region
      %s423 = ssub.s32 128, 128
      %424 = vsyncadd [#allocation4], %s423
      %s426 = sshll.u32 [#allocation5], 4
      %s427 = int_to_ptr.vmem [resolvable:$true] %s426
      %429 = dma.vmem_to_hbm [thread:$0]  %s427, 128, %s8, [#allocation4]
    $region41: #{tpu_custom_call.1} parent=1 // pred_fallthru
      _
    // Predicated region
    $region42: #{tpu_custom_call.1} parent=1 // pred_check
      _
    $region43: #{tpu_custom_call.1} parent=1 // pred_check_branch
      %431 = sbr.rel (0) target = $region45
    $region44: #{tpu_custom_call.1} parent=1 // pred_region
      %432 = dma.done [#allocation4], 128
    $region45: #{tpu_custom_call.1} parent=1 // pred_fallthru
      _
    %433 = vsyncpa [#allocation3], 1
    %434 = vsyncpa [#allocation4], 1

</llo_original>
